<compile_context>
chip_gen: v6e
topology: v6e:2x2x1
jax: 0.10.0
libtpu: 0.0.40
codegen_flags: <defaults>
</compile_context>

<pallas_src>
import jax
import jax.numpy as jnp
from jax import lax
from jax.experimental import pallas as pl
from jax.experimental.pallas import tpu as pltpu

HIDDEN = 20          # nn.GRU(vocabulary_size, 20, bidirectional=True)
NUM_CLASSES = 2      # nn.Linear(40, 2)


# ---------------------------------------------------------------------------
# Kernel 1: input projection for BOTH directions in one well-shaped matmul.
# (For realistic vocab sizes this would get a (rows, V-reduction) tiling grid;
#  at this module's sizes a single full-VMEM matmul is already optimal.)
# ---------------------------------------------------------------------------
def _proj_kernel(x_ref, w_ref, b_ref, o_ref):
    o_ref[...] = (jnp.dot(x_ref[...], w_ref[...],
                          preferred_element_type=jnp.float32) + b_ref[...])


def _project_inputs(x_tbv, wi_cat, bi_cat):
    T, B, V = x_tbv.shape
    G6 = wi_cat.shape[1]
    gates = pl.pallas_call(
        _proj_kernel,
        out_shape=jax.ShapeDtypeStruct((T * B, G6), jnp.float32),
        in_specs=[pl.BlockSpec(memory_space=pltpu.MemorySpace.VMEM)] * 3,
        out_specs=pl.BlockSpec(memory_space=pltpu.MemorySpace.VMEM),
    )(x_tbv.reshape(T * B, V), wi_cat, bi_cat)
    return gates.reshape(T, B, G6)


# ---------------------------------------------------------------------------
# Kernel 2: whole bidirectional recurrence + output-row selection + Linear(40,2)
# in ONE pallas_call. Everything stays resident in VMEM for the full time loop.
# ---------------------------------------------------------------------------
def _bigru_kernel(lens_ref, gates_ref, whh_ref, bhh_ref, wlc_ref, blc_ref, out_ref):
    H = HIDDEN
    G = 3 * H
    T, B, _ = gates_ref.shape

    lens = lens_ref[...].astype(jnp.int32)        # (B, 1)
    whh = whh_ref[...]                            # (2H, 6H) = block_diag(wh_f, wh_b)
    bhh = bhh_ref[...]                            # (1, 6H)  = [bh_f | bh_b]
    len0 = lens[0:1, :]                           # (1, 1)   length of batch element 0

    def step(t, carry):
        h, sel_f, sel_b = carry                   # (B,2H), (B,H), (B,H)
        rt = T - 1 - t

        # One fused MXU op for both directions' recurrent projections.
        gh = jnp.dot(h, whh, preferred_element_type=jnp.float32) + bhh    # (B, 6H)
        gh_f, gh_b = gh[:, 0:G], gh[:, G:2 * G]
        gi_f = gates_ref[t][:, 0:G]               # precomputed x_t  @ wi_f + bi_f
        gi_b = gates_ref[rt][:, G:2 * G]          # precomputed x_rt @ wi_b + bi_b
        hf, hb = h[:, 0:H], h[:, H:2 * H]

        # PyTorch GRU cell, gate order [r, z, n].
        def cell(gi, gh_, hprev):
            r = jax.nn.sigmoid(gi[:, 0:H] + gh_[:, 0:H])
            z = jax.nn.sigmoid(gi[:, H:2 * H] + gh_[:, H:2 * H])
            n = jnp.tanh(gi[:, 2 * H:] + r * gh_[:, 2 * H:])
            return (1.0 - z) * n + z * hprev

        hf_new = cell(gi_f, gh_f, hf)
        hb_new = cell(gi_b, gh_b, hb)

        # Packed-sequence masking: padded steps leave the hidden state untouched
        # (h_bw stays at its zero init until rt < L_b, matching PyTorch packed semantics).
        m_f = lens > t                            # (B, 1)
        m_b = lens > rt
        h_next = jnp.concatenate(
            [jnp.where(m_f, hf_new, hf), jnp.where(m_b, hb_new, hb)], axis=-1)

        # Capture the padded-output rows the module selects: out[L_b-1, 0, :] for each b.
        out_f0 = jnp.where(len0 > t, hf_new[0:1, :], 0.0)     # (1, H) batch-0 fw output @ t
        out_b0 = jnp.where(len0 > rt, hb_new[0:1, :], 0.0)    # (1, H) batch-0 bw output @ rt
        sel_f = jnp.where(lens == t + 1, out_f0, sel_f)
        sel_b = jnp.where(lens == rt + 1, out_b0, sel_b)
        return h_next, sel_f, sel_b

    init = (jnp.zeros((B, 2 * H), jnp.float32),
            jnp.zeros((B, H), jnp.float32),
            jnp.zeros((B, H), jnp.float32))
    _, sel_f, sel_b = lax.fori_loop(0, T, step, init, unroll=True)  # T is small here

    sel = jnp.concatenate([sel_f, sel_b], axis=-1)                  # (B, 2H)
    # TODO(synk): nn.Dropout(p=0.5) is identity in eval mode; training-mode RNG not implemented.
    out_ref[...] = (jnp.dot(sel, wlc_ref[...],
                            preferred_element_type=jnp.float32) + blc_ref[...])


def gru_module_forward(x_btv, lengths, params):
    """x_btv: (B, T, V) f32, lengths: (B,) int32 -> logits (B, 2)."""
    B, T, V = x_btv.shape
    H = HIDDEN
    x_tbv = jnp.transpose(x_btv, (1, 0, 2)).astype(jnp.float32)     # time-major (T, B, V)

    # Fold per-direction parameters into fused operands once (wrapper-side plumbing).
    wi_cat = jnp.concatenate([params["wi_f"], params["wi_b"]], axis=1)   # (V, 6H)
    bi_cat = jnp.concatenate([params["bi_f"], params["bi_b"]], axis=1)   # (1, 6H)
    whh = jnp.zeros((2 * H, 6 * H), jnp.float32)
    whh = whh.at[:H, :3 * H].set(params["wh_f"]).at[H:, 3 * H:].set(params["wh_b"])
    bhh = jnp.concatenate([params["bh_f"], params["bh_b"]], axis=1)      # (1, 6H)

    gates = _project_inputs(x_tbv, wi_cat, bi_cat)                       # (T, B, 6H)
    lens2d = lengths.reshape(B, 1).astype(jnp.int32)

    return pl.pallas_call(
        _bigru_kernel,
        out_shape=jax.ShapeDtypeStruct((B, NUM_CLASSES), jnp.float32),
        in_specs=[pl.BlockSpec(memory_space=pltpu.MemorySpace.VMEM)] * 6,
        out_specs=pl.BlockSpec(memory_space=pltpu.MemorySpace.VMEM),
    )(lens2d, gates, whh, bhh, params["w_lc"], params["b_lc"])


def init_params(key, vocab):
    H = HIDDEN
    keys = jax.random.split(key, 10)
    s_g = 1.0 / float(jnp.sqrt(H))
    s_l = 1.0 / float(jnp.sqrt(2 * H))
    u = lambda k, shape, s: jax.random.uniform(k, shape, jnp.float32, -s, s)
    return dict(
        wi_f=u(keys[0], (vocab, 3 * H), s_g), wh_f=u(keys[1], (H, 3 * H), s_g),
        bi_f=u(keys[2], (1, 3 * H), s_g),     bh_f=u(keys[3], (1, 3 * H), s_g),
        wi_b=u(keys[4], (vocab, 3 * H), s_g), wh_b=u(keys[5], (H, 3 * H), s_g),
        bi_b=u(keys[6], (1, 3 * H), s_g),     bh_b=u(keys[7], (1, 3 * H), s_g),
        w_lc=u(keys[8], (2 * H, NUM_CLASSES), s_l),
        b_lc=u(keys[9], (1, NUM_CLASSES), s_l),
    )


def reference_forward(x_btv, lengths, params):
    """Pure-JAX reference (mirrors the PyTorch module, incl. the index_select quirk)."""
    B, T, V = x_btv.shape
    H = HIDDEN
    x_tbv = jnp.transpose(x_btv, (1, 0, 2))
    lens = lengths.reshape(B, 1)

    def cell(x_t, h, wi, wh, bi, bh):
        gi = x_t @ wi + bi
        gh = h @ wh + bh
        r = jax.nn.sigmoid(gi[:, :H] + gh[:, :H])
        z = jax.nn.sigmoid(gi[:, H:2 * H] + gh[:, H:2 * H])
        n = jnp.tanh(gi[:, 2 * H:] + r * gh[:, 2 * H:])
        return (1.0 - z) * n + z * h

    def scan_dir(wi, wh, bi, bh, times):
        def step(h, t):
            hn = cell(x_tbv[t], h, wi, wh, bi, bh)
            m = lens > t
            h = jnp.where(m, hn, h)
            return h, jnp.where(m, hn, 0.0)
        _, outs = jax.lax.scan(step, jnp.zeros((B, H), jnp.float32), times)
        return outs

    out_f = scan_dir(params["wi_f"], params["wh_f"], params["bi_f"], params["bh_f"],
                     jnp.arange(T))
    out_b = scan_dir(params["wi_b"], params["wh_b"], params["bi_b"], params["bh_b"],
                     jnp.arange(T - 1, -1, -1))[::-1]
    out = jnp.concatenate([out_f, out_b], axis=-1)
    flat = out.reshape(T * B, 2 * H)
    idx = lengths * B - B
    sel = flat[idx]
    return sel @ params["w_lc"] + params["b_lc"]


if __name__ == "__main__":
    B, T, V = 2, 8, 16
    key = jax.random.PRNGKey(0)
    kx, kp = jax.random.split(key)
    x = jax.random.normal(kx, (B, T, V), jnp.float32)
    lengths = jnp.array([T, 5], dtype=jnp.int32)   # sorted descending (enforce_sorted=True)
    params = init_params(kp, V)

    out = gru_module_forward(x, lengths, params)
    jax.block_until_ready(out)

    ref = reference_forward(x, lengths, params)
    assert out.shape == (B, NUM_CLASSES), out.shape
    assert jnp.allclose(out, ref, atol=2e-5, rtol=2e-5), (out, ref)
    print("KERNEL_OK")
</pallas_src>

<mosaic_0001>
module attributes {stable_mosaic.version = 11 : i64} {
  func.func @_proj_kernel(%arg0: memref<16x16xf32, #tpu.memory_space<vmem>>, %arg1: memref<16x120xf32, #tpu.memory_space<vmem>>, %arg2: memref<1x120xf32, #tpu.memory_space<vmem>>, %arg3: memref<16x120xf32, #tpu.memory_space<vmem>>) attributes {dimension_semantics = [], scalar_prefetch = 0 : i64, scratch_operands = 0 : i64, tpu.core_type = #tpu.core_type<tc>} {
    %c0 = arith.constant 0 : index
    %c0_0 = arith.constant 0 : index
    %0 = vector.load %arg0[%c0, %c0_0] : memref<16x16xf32, #tpu.memory_space<vmem>>, vector<16x16xf32>
    %c0_1 = arith.constant 0 : index
    %c0_2 = arith.constant 0 : index
    %1 = vector.load %arg1[%c0_1, %c0_2] : memref<16x120xf32, #tpu.memory_space<vmem>>, vector<16x120xf32>
    %cst = arith.constant dense<0.000000e+00> : vector<16x120xf32>
    %2 = tpu.matmul %0, %1, %cst {dimension_numbers = #tpu.dot_dimension_numbers<[1], [0], [0], [1], [0, 0, 1, 1], [], []>} : vector<16x16xf32>, vector<16x120xf32>, vector<16x120xf32> -> vector<16x120xf32>
    %c0_3 = arith.constant 0 : index
    %c0_4 = arith.constant 0 : index
    %3 = vector.load %arg2[%c0_3, %c0_4] : memref<1x120xf32, #tpu.memory_space<vmem>>, vector<1x120xf32>
    %4 = vector.broadcast %3 : vector<1x120xf32> to vector<16x120xf32>
    %5 = arith.addf %2, %4 : vector<16x120xf32>
    %c0_5 = arith.constant 0 : index
    %c0_6 = arith.constant 0 : index
    %6 = vector.load %arg3[%c0_5, %c0_6] : memref<16x120xf32, #tpu.memory_space<vmem>>, vector<16x120xf32>
    tpu.vector_store %arg3[%c0_5, %c0_6], %5 {strides = array<i32>} : memref<16x120xf32, #tpu.memory_space<vmem>>, vector<16x120xf32>,
    return
  }
}

</mosaic_0001>

<llo_original>
// kernel: tpu_custom_call.1
$region0: #{tpu_custom_call.1}
  #allocation0 [shape = 'u32[]', space=smem, size = 0x4, offset = 0x4, fixed_abs, tag = 'smem constant byte address 0x4 - core index']
  #allocation1 [shape = 'u32[144,128]{1,0:T(1,128)}', space=vmem, size = 0x12000, scoped, tag = 'internal scratch']
  %s0 = inlined_call_operand.hbm [shape: f32[16,16], index: 0, kind: input, shape index: {}]
  %s1 = inlined_call_operand.hbm [shape: f32[16,120], index: 1, kind: input, shape index: {}]
  %s2 = inlined_call_operand.vmem [shape: f32[1,120], index: 2, kind: input, shape index: {}]
  %s3 = inlined_call_operand.hbm [shape: f32[16,120], index: 3, kind: output, shape index: {}]
  %s4 = sld [smem:[#allocation0]]
  $region30: #{tpu_custom_call.1} parent=0
    _
  %s6 = ssub.s32 1, %s4
  %s7 = scalar_select 0, %s6, %s4
  $region1: #{tpu_custom_call.1} parent=0
    #allocation2 [shape = 'u8[8192]{0}', space=vmem, size = 0x2000, scoped, tag = 'input window, operand 0, single buffered']
    #allocation3 [shape = 's32[1]{0}', space=sflag, size = 0x4, scoped, tag = 'scoped memory for tpu_custom_call.1']
    #allocation4 [shape = 's32[1]{0}', space=sflag, size = 0x4, scoped, tag = 'scoped memory for tpu_custom_call.1']
    #allocation5 [shape = 'u8[8192]{0}', space=vmem, size = 0x2000, scoped, tag = 'input window, operand 1, single buffered']
    #allocation6 [shape = 's32[1]{0}', space=sflag, size = 0x4, scoped, tag = 'scoped memory for tpu_custom_call.1']
    #allocation7 [shape = 'u8[8192]{0}', space=vmem, size = 0x2000, scoped, tag = 'output window, operand 0, single buffered']
    %8 = vsyncpa [#allocation3], 0
    %9 = vsyncpa [#allocation6], 0
    %10 = vsyncpa [#allocation4], 0
    // Predicated region
    $region2: #{tpu_custom_call.1} parent=1 // pred_check
      _
    $region3: #{tpu_custom_call.1} parent=1 // pred_check_branch
      %12 = sbr.rel (0) target = $region5
    $region4: #{tpu_custom_call.1} parent=1 // pred_region
      %s14 = ssub.s32 256, 256
      %15 = vsyncadd [#allocation3], %s14
      %s16 = sshll.u32 [#allocation2], 4
      %s17 = int_to_ptr.vmem [resolvable:$true] %s16
      %22 = dma.hbm_to_vmem [thread:$0]  %s0, 256, %s17, [#allocation3], 128, 128, 8
    $region5: #{tpu_custom_call.1} parent=1 // pred_fallthru
      _
    // Predicated region
    $region6: #{tpu_custom_call.1} parent=1 // pred_check
      _
    $region7: #{tpu_custom_call.1} parent=1 // pred_check_branch
      %24 = sbr.rel (0) target = $region9
    $region8: #{tpu_custom_call.1} parent=1 // pred_region
      %s26 = ssub.s32 256, 256
      %27 = vsyncadd [#allocation6], %s26
      %s28 = sshll.u32 [#allocation5], 4
      %s29 = int_to_ptr.vmem [resolvable:$true] %s28
      %34 = dma.hbm_to_vmem [thread:$0]  %s1, 256, %s29, [#allocation6], 128, 128, 8
    $region9: #{tpu_custom_call.1} parent=1 // pred_fallthru
      _
    // Predicated region
    $region10: #{tpu_custom_call.1} parent=1 // pred_check
      _
    $region11: #{tpu_custom_call.1} parent=1 // pred_check_branch
      %36 = sbr.rel (0) target = $region13
    $region12: #{tpu_custom_call.1} parent=1 // pred_region
      _
    $region13: #{tpu_custom_call.1} parent=1 // pred_fallthru
      _
    // Predicated region
    $region14: #{tpu_custom_call.1} parent=1 // pred_check
      _
    $region15: #{tpu_custom_call.1} parent=1 // pred_check_branch
      %38 = sbr.rel (0) target = $region17
    $region16: #{tpu_custom_call.1} parent=1 // pred_region
      %39 = dma.done [#allocation3], 256
    $region17: #{tpu_custom_call.1} parent=1 // pred_fallthru
      _
    // Predicated region
    $region18: #{tpu_custom_call.1} parent=1 // pred_check
      _
    $region19: #{tpu_custom_call.1} parent=1 // pred_check_branch
      %41 = sbr.rel (0) target = $region21
    $region20: #{tpu_custom_call.1} parent=1 // pred_region
      %42 = dma.done [#allocation6], 256
    $region21: #{tpu_custom_call.1} parent=1 // pred_fallthru
      _
    %v43 = vld [vmem:[#allocation2] sm:$0xff]
    %v44 = vld [vmem:[#allocation2 + $0x8] sm:$0xff]
    %v45 = vld [vmem:[#allocation5] sm:$0xff]
    %v46 = vld [vmem:[#allocation5 + $0x8] sm:$0xff]
    %v47 = vld [vmem:[%s2] sm:$0x1]
    %v49 = vlaneseq
    %v50 = vshrl.u32 %v49, 7
    %v51 = vsub.s32 0, %v50
    %v52 = vrot.slane %v47, %v51
    %vm54 = vcmask 130048
    %v56 = vsel %vm54, %v43, 0
    %v59 = vsel %vm54, %v44, 0
    %61 = vmatprep.subr.mxu0 0.0
    %62 = vmatpush1.msra.mxu0 0.0
    %63 = vmatprep.subr.mxu0 0.0
    %64 = vmatpush1.msra.mxu0 0.0
    %65 = vmatprep.subr.mxu0 0.0
    %66 = vmatpush1.msra.mxu0 0.0
    %67 = vmatprep.subr.mxu0 0.0
    %68 = vmatpush1.msra.mxu0 0.0
    %69 = vmatprep.subr.mxu0 0.0
    %70 = vmatpush1.msra.mxu0 0.0
    %71 = vmatprep.subr.mxu0 0.0
    %72 = vmatpush1.msra.mxu0 0.0
    %73 = vmatprep.subr.mxu0 0.0
    %74 = vmatpush1.msra.mxu0 0.0
    %75 = vmatprep.subr.mxu0 0.0
    %76 = vmatpush1.msra.mxu0 0.0
    %77 = vmatprep.subr.mxu0 0.0
    %78 = vmatpush1.msra.mxu0 0.0
    %79 = vmatprep.subr.mxu0 0.0
    %80 = vmatpush1.msra.mxu0 0.0
    %81 = vmatprep.subr.mxu0 0.0
    %82 = vmatpush1.msra.mxu0 0.0
    %83 = vmatprep.subr.mxu0 0.0
    %84 = vmatpush1.msra.mxu0 0.0
    %85 = vmatprep.subr.mxu0 0.0
    %86 = vmatpush1.msra.mxu0 0.0
    %87 = vmatprep.subr.mxu0 0.0
    %88 = vmatpush1.msra.mxu0 0.0
    %89 = vmatprep.subr.mxu0 0.0
    %90 = vmatpush1.msra.mxu0 %v46
    %91 = vmatprep.subr.mxu0 0.0
    %92 = vmatpush1.msra.mxu0 %v45
    %93 = vmatprep.subr.mxu0 0.0
    %94 = vmatpush2.msra.mxu0 0.0
    %95 = vmatprep.subr.mxu0 0.0
    %96 = vmatpush2.msra.mxu0 0.0
    %97 = vmatprep.subr.mxu0 0.0
    %98 = vmatpush2.msra.mxu0 0.0
    %99 = vmatprep.subr.mxu0 0.0
    %100 = vmatpush2.msra.mxu0 0.0
    %101 = vmatprep.subr.mxu0 0.0
    %102 = vmatpush2.msra.mxu0 0.0
    %103 = vmatprep.subr.mxu0 0.0
    %104 = vmatpush2.msra.mxu0 0.0
    %105 = vmatprep.subr.mxu0 0.0
    %106 = vmatpush2.msra.mxu0 0.0
    %107 = vmatprep.subr.mxu0 0.0
    %108 = vmatpush2.msra.mxu0 0.0
    %109 = vmatprep.subr.mxu0 0.0
    %110 = vmatpush2.msra.mxu0 0.0
    %111 = vmatprep.subr.mxu0 0.0
    %112 = vmatpush2.msra.mxu0 0.0
    %113 = vmatprep.subr.mxu0 0.0
    %114 = vmatpush2.msra.mxu0 0.0
    %115 = vmatprep.subr.mxu0 0.0
    %116 = vmatpush2.msra.mxu0 0.0
    %117 = vmatprep.subr.mxu0 0.0
    %118 = vmatpush2.msra.mxu0 0.0
    %119 = vmatprep.subr.mxu0 0.0
    %120 = vmatpush2.msra.mxu0 0.0
    %121 = vmatprep.subr.mxu0 0.0
    %122 = vmatpush2.msra.mxu0 0.0
    %123 = vmatprep.subr.mxu0 0.0
    %124 = vmatpush2.msra.mxu0 0.0
    %125 = vmatprep.mubr.f32.mxu0 0.0
    %126 = vmatmul.mubr.f32.gmra.mxu0 %v56
    %v127 = vpop.f32.mrf.mxu0
    %v128 = vadd.f32 %v52, %v127
    %v129 = vpop.f32.mrf.mxu0
    %130 = vmatprep.mubr.f32.mxu0 0.0
    %131 = vmatmul.mubr.f32.gmra.mxu0 %v59
    %v132 = vpop.f32.mrf.mxu0
    %v133 = vadd.f32 %v52, %v132
    %v134 = vpop.f32.mrf.mxu0
    %135 = vdwg.mxu0
    %vm136 = vcmask 982016
    %137 = vst.msk [vmem:[#allocation7] sm:$0xff] %vm136, %v128
    %138 = vst.msk [vmem:[#allocation7 + $0x8] sm:$0xff] %vm136, %v133
    // Predicated region
    $region22: #{tpu_custom_call.1} parent=1 // pred_check
      _
    $region23: #{tpu_custom_call.1} parent=1 // pred_check_branch
      %140 = sbr.rel (0) target = $region25
    $region24: #{tpu_custom_call.1} parent=1 // pred_region
      %s142 = ssub.s32 256, 256
      %143 = vsyncadd [#allocation4], %s142
      %s144 = sshll.u32 [#allocation7], 4
      %s145 = int_to_ptr.vmem [resolvable:$true] %s144
      %150 = dma.vmem_to_hbm [thread:$0]  %s145, 256, %s3, [#allocation4], 128, 128, 8
    $region25: #{tpu_custom_call.1} parent=1 // pred_fallthru
      _
    // Predicated region
    $region26: #{tpu_custom_call.1} parent=1 // pred_check
      _
    $region27: #{tpu_custom_call.1} parent=1 // pred_check_branch
      %152 = sbr.rel (0) target = $region29
    $region28: #{tpu_custom_call.1} parent=1 // pred_region
      %153 = dma.done [#allocation4], 256
    $region29: #{tpu_custom_call.1} parent=1 // pred_fallthru
      _
    %154 = vsyncpa [#allocation3], 1
    %155 = vsyncpa [#allocation6], 1
    %156 = vsyncpa [#allocation4], 1

</llo_original>
